<compile_context>
chip_gen: v5e
topology: v5e:2x2
jax: 0.10.0
libtpu: 0.0.40
codegen_flags: <defaults>
</compile_context>

<pallas_src>
import functools

import jax
import jax.numpy as jnp
from jax.experimental import pallas as pl
from jax.experimental.pallas import tpu as pltpu

BN_EPS = 1e-5


def _round_up(a, m):
    return (a + m - 1) // m * m


def _fold_groups(v, pack):
    """Sum a (1, f*pack) row vector across its `pack` lane groups.

    Returns per-feature totals replicated into every group's lanes (exactly
    the layout the packed BN affine needs), using only XLU lane rotations.
    """
    if pack == 1:
        return v
    f_lanes = v.shape[-1] // pack
    out = v
    for j in range(1, pack):
        out = out + pltpu.roll(v, shift=j * f_lanes, axis=1)
    return out


def _stats_kernel(x_ref, w1_ref, gamma_ref, beta_ref,
                  scale_ref, shift_ref,
                  sum_ref, sumsq_ref, pivot_ref, *, inv_m, mp, pack):
    """Pass 1 (sequential grid): accumulate pivoted per-lane sum / sumsq of
    h = x_packed @ W1_bd, fold groups and emit the fused BN affine
        scale = gamma * rsqrt(var + eps),  shift = beta - mean * scale
    on the last tile."""
    i = pl.program_id(0)
    tile_rows = x_ref.shape[0]

    # bf16 cast is in-kernel (VPU filler) so the wrapper never makes a cast or
    # pad pass over the (M, F) slab in HBM.  linear1's bias is omitted: it
    # cancels exactly under training-mode batch norm.
    h = jnp.dot(x_ref[...].astype(jnp.bfloat16), w1_ref[...],
                preferred_element_type=jnp.float32)

    # Row-mask the (possibly partial) last tile: grid = cdiv(mp, tile_rows),
    # so OOB packed rows hold garbage and must not touch the statistics.
    row = jax.lax.broadcasted_iota(jnp.int32, h.shape, 0) + i * tile_rows
    valid = row < mp

    @pl.when(i == 0)
    def _():
        sum_ref[...] = jnp.zeros_like(sum_ref)
        sumsq_ref[...] = jnp.zeros_like(sumsq_ref)
        # Per-feature pivot (~ first tile's column mean, replicated across the
        # lane groups).  Any constant works; it only conditions the variance
        # against catastrophic cancellation.
        p = _fold_groups(
            jnp.sum(jnp.where(valid, h, 0.0), axis=0, keepdims=True), pack)
        pivot_ref[...] = p * (1.0 / (tile_rows * pack))

    hc = jnp.where(valid, h - pivot_ref[...], 0.0)
    sum_ref[...] += jnp.sum(hc, axis=0, keepdims=True)
    sumsq_ref[...] += jnp.sum(hc * hc, axis=0, keepdims=True)

    @pl.when(i == pl.num_programs(0) - 1)
    def _():
        s = _fold_groups(sum_ref[...], pack) * inv_m      # E[h] - pivot
        ss = _fold_groups(sumsq_ref[...], pack) * inv_m   # E[(h - pivot)^2]
        var = jnp.maximum(ss - s * s, 0.0)                # biased (training)
        sc = gamma_ref[...] * jax.lax.rsqrt(var + BN_EPS)
        scale_ref[...] = sc
        shift_ref[...] = beta_ref[...] - (pivot_ref[...] + s) * sc


def _apply_kernel(x_ref, w1_ref, scale_ref, shift_ref, w2_ref, b2_ref, o_ref):
    """Pass 2 (parallel grid): recompute h per tile, fused normalize (1 FMA)
    + ReLU, second matmul, lane-packed store."""
    h = jnp.dot(x_ref[...].astype(jnp.bfloat16), w1_ref[...],
                preferred_element_type=jnp.float32)
    y = jnp.maximum(h * scale_ref[...] + shift_ref[...], 0.0)
    out = jnp.dot(y.astype(jnp.bfloat16), w2_ref[...],
                  preferred_element_type=jnp.float32) + b2_ref[...]
    o_ref[...] = out.astype(o_ref.dtype)


def position_encoder(x, w1, b1, gamma, beta, w2, b2, *, tm_max=8192):
    """x: (b, n, k, f).  w1: (f, f), b1: (f,), gamma/beta: (f,),
    w2: (out, f), b2: (out,).  Returns (b, n, k, out)."""
    del b1  # cancels exactly under training-mode BatchNorm (mean subtraction)

    b, n, k, f = x.shape
    out_c = w2.shape[0]
    M = b * n * k

    # ---- lane packing: f lanes -> f*pack (=128 when f | 128) --------------
    pack = 128 // f if (f <= 128 and 128 % f == 0) else 1
    while M % pack != 0:          # fall back gracefully for awkward M
        pack //= 2
    mp, fp, op = M // pack, f * pack, out_c * pack

    # ---- row tiling over packed rows --------------------------------------
    # tm_max original rows per tile (default 8192 -> 2048 packed rows): the
    # f32 x tile is ~1 MiB / buffer, the packed output tile ~0.5 MiB, both far
    # under scoped VMEM on v5e/v6e/v7x while amortizing the ~600-cycle
    # per-grid-step overhead.
    tmp = min(_round_up(mp, 8), _round_up(max(8, tm_max // pack), 8))
    num_tiles = (mp + tmp - 1) // tmp

    # ---- parameter prep (tiny arrays only; x is a pure metadata reshape) ---
    x_p = x.reshape(mp, fp)                               # no cast, no pad
    eye = jnp.eye(pack, dtype=jnp.float32)
    w1_bd = jnp.kron(eye, w1.astype(jnp.float32).T).astype(jnp.bfloat16)  # (fp, fp)
    w2_bd = jnp.kron(eye, w2.astype(jnp.float32).T).astype(jnp.bfloat16)  # (fp, op)
    g_t = jnp.tile(gamma.astype(jnp.float32), pack).reshape(1, fp)
    be_t = jnp.tile(beta.astype(jnp.float32), pack).reshape(1, fp)
    b2_t = jnp.tile(b2.astype(jnp.float32), pack).reshape(1, op)

    # ---- pass 1: BN statistics -> fused affine (scale, shift) -------------
    scale, shift = pl.pallas_call(
        functools.partial(_stats_kernel, inv_m=1.0 / M, mp=mp, pack=pack),
        out_shape=(jax.ShapeDtypeStruct((1, fp), jnp.float32),
                   jax.ShapeDtypeStruct((1, fp), jnp.float32)),
        grid=(num_tiles,),
        in_specs=[
            pl.BlockSpec((tmp, fp), lambda i: (i, 0)),    # x tile (streamed)
            pl.BlockSpec((fp, fp), lambda i: (0, 0)),     # W1 block-diag
            pl.BlockSpec((1, fp), lambda i: (0, 0)),      # gamma (tiled)
            pl.BlockSpec((1, fp), lambda i: (0, 0)),      # beta  (tiled)
        ],
        out_specs=(pl.BlockSpec((1, fp), lambda i: (0, 0)),
                   pl.BlockSpec((1, fp), lambda i: (0, 0))),
        scratch_shapes=[pltpu.VMEM((1, fp), jnp.float32),   # sum
                        pltpu.VMEM((1, fp), jnp.float32),   # sumsq
                        pltpu.VMEM((1, fp), jnp.float32)],  # pivot
        compiler_params=pltpu.CompilerParams(
            dimension_semantics=("arbitrary",)),             # sequential reduce
        # TODO(synk): on v7x, split this reduction across the two TensorCores
        # (leading parallel axis + per-core partials) for ~2x on pass 1.
    )(x_p, w1_bd, g_t, be_t)

    # ---- pass 2: recompute h, normalize + ReLU + linear2 -------------------
    out_p = pl.pallas_call(
        _apply_kernel,
        out_shape=jax.ShapeDtypeStruct((mp, op), x.dtype),
        grid=(num_tiles,),
        in_specs=[
            pl.BlockSpec((tmp, fp), lambda i: (i, 0)),    # x tile (streamed)
            pl.BlockSpec((fp, fp), lambda i: (0, 0)),     # W1 block-diag
            pl.BlockSpec((1, fp), lambda i: (0, 0)),      # BN scale
            pl.BlockSpec((1, fp), lambda i: (0, 0)),      # BN shift
            pl.BlockSpec((fp, op), lambda i: (0, 0)),     # W2 block-diag
            pl.BlockSpec((1, op), lambda i: (0, 0)),      # b2 (tiled)
        ],
        out_specs=pl.BlockSpec((tmp, op), lambda i: (i, 0)),
        compiler_params=pltpu.CompilerParams(
            dimension_semantics=("parallel",)),            # megacore-friendly
    )(x_p, w1_bd, scale, shift, w2_bd, b2_t)

    # Lane-packed (mp, out_c*pack) -> (b, n, k, out_c): metadata-only reshape.
    return out_p.reshape(b, n, k, out_c)


def position_encoder_ref(x, w1, b1, gamma, beta, w2, b2):
    """Pure-JAX f32 reference mirroring the PyTorch forward (training BN)."""
    b, n, k, f = x.shape
    h = jnp.einsum("bnkf,gf->bnkg", x, w1) + b1
    h2 = h.reshape(b * n * k, f)
    mean = jnp.mean(h2, axis=0)
    var = jnp.mean((h2 - mean) ** 2, axis=0)       # biased (training) variance
    h2 = (h2 - mean) / jnp.sqrt(var + BN_EPS) * gamma + beta
    h2 = jnp.maximum(h2, 0.0)
    out = h2 @ w2.T + b2
    return out.reshape(b, n, k, -1)


if __name__ == "__main__":
    # Small deterministic example chosen so the kernel exercises the F->128
    # lane packing, multiple row tiles AND a partial (masked) last tile:
    # b=2, n=3, k=20 -> M=120 rows, pack=4 -> 30 packed rows; tm_max=64 gives
    # 16-packed-row tiles -> 2 tiles, last one partial.
    b, n, k = 2, 3, 20
    in_channel, out_channel = 32, 16

    key = jax.random.PRNGKey(0)
    kx, kw1, kb1, kg, kbe, kw2, kb2 = jax.random.split(key, 7)

    x = jax.random.normal(kx, (b, n, k, in_channel), dtype=jnp.float32)
    w1 = jax.random.normal(kw1, (in_channel, in_channel), dtype=jnp.float32) * 0.1
    b1 = jax.random.normal(kb1, (in_channel,), dtype=jnp.float32) * 0.1
    gamma = 1.0 + 0.1 * jax.random.normal(kg, (in_channel,), dtype=jnp.float32)
    beta = 0.1 * jax.random.normal(kbe, (in_channel,), dtype=jnp.float32)
    w2 = jax.random.normal(kw2, (out_channel, in_channel), dtype=jnp.float32) * 0.1
    b2 = jax.random.normal(kb2, (out_channel,), dtype=jnp.float32) * 0.1

    out = position_encoder(x, w1, b1, gamma, beta, w2, b2, tm_max=64)
    out = jax.block_until_ready(out)

    ref = position_encoder_ref(x, w1, b1, gamma, beta, w2, b2)
    assert out.shape == (b, n, k, out_channel), out.shape
    # Tolerance accounts for bf16 MXU operands (f32 accumulation / BN stats).
    assert jnp.allclose(out, ref, atol=3e-2, rtol=3e-2), "mismatch vs reference"

    print("KERNEL_OK")
</pallas_src>

<mosaic_0001>
module attributes {stable_mosaic.version = 11 : i64} {
  func.func @_stats_kernel(%arg0: i32, %arg1: memref<16x128xf32, #tpu.memory_space<vmem>>, %arg2: memref<128x128xbf16, #tpu.memory_space<vmem>>, %arg3: memref<1x128xf32, #tpu.memory_space<vmem>>, %arg4: memref<1x128xf32, #tpu.memory_space<vmem>>, %arg5: memref<1x128xf32, #tpu.memory_space<vmem>>, %arg6: memref<1x128xf32, #tpu.memory_space<vmem>>, %arg7: memref<1x128xf32, #tpu.memory_space<vmem>>, %arg8: memref<1x128xf32, #tpu.memory_space<vmem>>, %arg9: memref<1x128xf32, #tpu.memory_space<vmem>>) attributes {dimension_semantics = [#tpu.dimension_semantics<arbitrary>], iteration_bounds = array<i64: 2>, scalar_prefetch = 0 : i64, scratch_operands = 3 : i64, tpu.core_type = #tpu.core_type<tc>, window_params = [{transform_indices = @transform_0, window_bounds = array<i64: 16, 128>}, {pipeline_mode = #tpu.pipeline_mode<synchronous>, transform_indices = @transform_1, window_bounds = array<i64: 128, 128>}, {pipeline_mode = #tpu.pipeline_mode<synchronous>, transform_indices = @transform_2, window_bounds = array<i64: 1, 128>}, {pipeline_mode = #tpu.pipeline_mode<synchronous>, transform_indices = @transform_3, window_bounds = array<i64: 1, 128>}, {pipeline_mode = #tpu.pipeline_mode<synchronous>, transform_indices = @transform_4, window_bounds = array<i64: 1, 128>}, {pipeline_mode = #tpu.pipeline_mode<synchronous>, transform_indices = @transform_5, window_bounds = array<i64: 1, 128>}]} {
    %c0 = arith.constant 0 : index
    %c0_0 = arith.constant 0 : index
    %0 = vector.load %arg1[%c0, %c0_0] : memref<16x128xf32, #tpu.memory_space<vmem>>, vector<16x128xf32>
    %1 = arith.truncf %0 : vector<16x128xf32> to vector<16x128xbf16>
    %c0_1 = arith.constant 0 : index
    %c0_2 = arith.constant 0 : index
    %2 = vector.load %arg2[%c0_1, %c0_2] : memref<128x128xbf16, #tpu.memory_space<vmem>>, vector<128x128xbf16>
    %cst = arith.constant dense<0.000000e+00> : vector<16x128xf32>
    %3 = tpu.matmul %1, %2, %cst {dimension_numbers = #tpu.dot_dimension_numbers<[1], [0], [0], [1], [0, 0, 1, 1], [], []>} : vector<16x128xbf16>, vector<128x128xbf16>, vector<16x128xf32> -> vector<16x128xf32>
    %4 = tpu.iota {dimensions = array<i32: 0>} : vector<16x128xi32>
    %c16_i32 = arith.constant 16 : i32
    %5 = arith.muli %arg0, %c16_i32 : i32
    %6 = vector.broadcast %5 : i32 to vector<16x128xi32>
    %7 = arith.addi %4, %6 : vector<16x128xi32>
    %c30_i32 = arith.constant 30 : i32
    %8 = vector.broadcast %c30_i32 : i32 to vector<16x128xi32>
    %9 = arith.cmpi slt, %7, %8 : vector<16x128xi32>
    %c0_i32 = arith.constant 0 : i32
    %10 = arith.cmpi eq, %arg0, %c0_i32 : i32
    %11 = arith.extui %10 : i1 to i32
    %c0_i32_3 = arith.constant 0 : i32
    %12 = arith.cmpi ne, %11, %c0_i32_3 : i32
    scf.if %12 {
      %cst_18 = arith.constant 0.000000e+00 : f32
      %32 = vector.broadcast %cst_18 : f32 to vector<1x128xf32>
      %c0_19 = arith.constant 0 : index
      %c0_20 = arith.constant 0 : index
      %33 = vector.load %arg7[%c0_19, %c0_20] : memref<1x128xf32, #tpu.memory_space<vmem>>, vector<1x128xf32>
      tpu.vector_store %arg7[%c0_19, %c0_20], %32 {strides = array<i32>} : memref<1x128xf32, #tpu.memory_space<vmem>>, vector<1x128xf32>,
      %cst_21 = arith.constant 0.000000e+00 : f32
      %34 = vector.broadcast %cst_21 : f32 to vector<1x128xf32>
      %c0_22 = arith.constant 0 : index
      %c0_23 = arith.constant 0 : index
      %35 = vector.load %arg8[%c0_22, %c0_23] : memref<1x128xf32, #tpu.memory_space<vmem>>, vector<1x128xf32>
      tpu.vector_store %arg8[%c0_22, %c0_23], %34 {strides = array<i32>} : memref<1x128xf32, #tpu.memory_space<vmem>>, vector<1x128xf32>,
      %cst_24 = arith.constant 0.000000e+00 : f32
      %36 = vector.broadcast %cst_24 : f32 to vector<16x128xf32>
      %37 = arith.select %9, %3, %36 : vector<16x128xi1>, vector<16x128xf32>
      %cst_25 = arith.constant dense<0.000000e+00> : vector<128xf32>
      %38 = vector.multi_reduction <add>, %37, %cst_25 [0] : vector<16x128xf32> to vector<128xf32>
      %39 = vector.shape_cast %38 : vector<128xf32> to vector<1x128xf32>
      %c32_i32 = arith.constant 32 : i32
      %40 = tpu.dynamic_rotate %39 by %c32_i32 dim 1 : vector<1x128xf32>, i32 -> vector<1x128xf32>
      %41 = arith.addf %39, %40 : vector<1x128xf32>
      %c64_i32 = arith.constant 64 : i32
      %42 = tpu.dynamic_rotate %39 by %c64_i32 dim 1 : vector<1x128xf32>, i32 -> vector<1x128xf32>
      %43 = arith.addf %41, %42 : vector<1x128xf32>
      %c96_i32 = arith.constant 96 : i32
      %44 = tpu.dynamic_rotate %39 by %c96_i32 dim 1 : vector<1x128xf32>, i32 -> vector<1x128xf32>
      %45 = arith.addf %43, %44 : vector<1x128xf32>
      %cst_26 = arith.constant 1.562500e-02 : f32
      %46 = vector.broadcast %cst_26 : f32 to vector<1x128xf32>
      %47 = arith.mulf %45, %46 : vector<1x128xf32>
      %c0_27 = arith.constant 0 : index
      %c0_28 = arith.constant 0 : index
      %48 = vector.load %arg9[%c0_27, %c0_28] : memref<1x128xf32, #tpu.memory_space<vmem>>, vector<1x128xf32>
      tpu.vector_store %arg9[%c0_27, %c0_28], %47 {strides = array<i32>} : memref<1x128xf32, #tpu.memory_space<vmem>>, vector<1x128xf32>,
    } else {
    }
    %c0_4 = arith.constant 0 : index
    %c0_5 = arith.constant 0 : index
    %13 = vector.load %arg9[%c0_4, %c0_5] : memref<1x128xf32, #tpu.memory_space<vmem>>, vector<1x128xf32>
    %14 = vector.broadcast %13 : vector<1x128xf32> to vector<16x128xf32>
    %15 = arith.subf %3, %14 : vector<16x128xf32>
    %cst_6 = arith.constant 0.000000e+00 : f32
    %16 = vector.broadcast %cst_6 : f32 to vector<16x128xf32>
    %17 = arith.select %9, %15, %16 : vector<16x128xi1>, vector<16x128xf32>
    %c0_7 = arith.constant 0 : index
    %c0_8 = arith.constant 0 : index
    %18 = vector.load %arg7[%c0_7, %c0_8] : memref<1x128xf32, #tpu.memory_space<vmem>>, vector<1x128xf32>
    %cst_9 = arith.constant dense<0.000000e+00> : vector<128xf32>
    %19 = vector.multi_reduction <add>, %17, %cst_9 [0] : vector<16x128xf32> to vector<128xf32>
    %20 = vector.shape_cast %19 : vector<128xf32> to vector<1x128xf32>
    %21 = arith.addf %18, %20 : vector<1x128xf32>
    %c0_10 = arith.constant 0 : index
    %c0_11 = arith.constant 0 : index
    %22 = vector.load %arg7[%c0_10, %c0_11] : memref<1x128xf32, #tpu.memory_space<vmem>>, vector<1x128xf32>
    tpu.vector_store %arg7[%c0_10, %c0_11], %21 {strides = array<i32>} : memref<1x128xf32, #tpu.memory_space<vmem>>, vector<1x128xf32>,
    %c0_12 = arith.constant 0 : index
    %c0_13 = arith.constant 0 : index
    %23 = vector.load %arg8[%c0_12, %c0_13] : memref<1x128xf32, #tpu.memory_space<vmem>>, vector<1x128xf32>
    %24 = arith.mulf %17, %17 : vector<16x128xf32>
    %cst_14 = arith.constant dense<0.000000e+00> : vector<128xf32>
    %25 = vector.multi_reduction <add>, %24, %cst_14 [0] : vector<16x128xf32> to vector<128xf32>
    %26 = vector.shape_cast %25 : vector<128xf32> to vector<1x128xf32>
    %27 = arith.addf %23, %26 : vector<1x128xf32>
    %c0_15 = arith.constant 0 : index
    %c0_16 = arith.constant 0 : index
    %28 = vector.load %arg8[%c0_15, %c0_16] : memref<1x128xf32, #tpu.memory_space<vmem>>, vector<1x128xf32>
    tpu.vector_store %arg8[%c0_15, %c0_16], %27 {strides = array<i32>} : memref<1x128xf32, #tpu.memory_space<vmem>>, vector<1x128xf32>,
    %c1_i32 = arith.constant 1 : i32
    %29 = arith.cmpi eq, %arg0, %c1_i32 : i32
    %30 = arith.extui %29 : i1 to i32
    %c0_i32_17 = arith.constant 0 : i32
    %31 = arith.cmpi ne, %30, %c0_i32_17 : i32
    scf.if %31 {
      %c0_18 = arith.constant 0 : index
      %c0_19 = arith.constant 0 : index
      %32 = vector.load %arg7[%c0_18, %c0_19] : memref<1x128xf32, #tpu.memory_space<vmem>>, vector<1x128xf32>
      %c32_i32 = arith.constant 32 : i32
      %33 = tpu.dynamic_rotate %32 by %c32_i32 dim 1 : vector<1x128xf32>, i32 -> vector<1x128xf32>
      %34 = arith.addf %32, %33 : vector<1x128xf32>
      %c64_i32 = arith.constant 64 : i32
      %35 = tpu.dynamic_rotate %32 by %c64_i32 dim 1 : vector<1x128xf32>, i32 -> vector<1x128xf32>
      %36 = arith.addf %34, %35 : vector<1x128xf32>
      %c96_i32 = arith.constant 96 : i32
      %37 = tpu.dynamic_rotate %32 by %c96_i32 dim 1 : vector<1x128xf32>, i32 -> vector<1x128xf32>
      %38 = arith.addf %36, %37 : vector<1x128xf32>
      %cst_20 = arith.constant 0.00833333377 : f32
      %39 = vector.broadcast %cst_20 : f32 to vector<1x128xf32>
      %40 = arith.mulf %38, %39 : vector<1x128xf32>
      %c0_21 = arith.constant 0 : index
      %c0_22 = arith.constant 0 : index
      %41 = vector.load %arg8[%c0_21, %c0_22] : memref<1x128xf32, #tpu.memory_space<vmem>>, vector<1x128xf32>
      %c32_i32_23 = arith.constant 32 : i32
      %42 = tpu.dynamic_rotate %41 by %c32_i32_23 dim 1 : vector<1x128xf32>, i32 -> vector<1x128xf32>
      %43 = arith.addf %41, %42 : vector<1x128xf32>
      %c64_i32_24 = arith.constant 64 : i32
      %44 = tpu.dynamic_rotate %41 by %c64_i32_24 dim 1 : vector<1x128xf32>, i32 -> vector<1x128xf32>
      %45 = arith.addf %43, %44 : vector<1x128xf32>
      %c96_i32_25 = arith.constant 96 : i32
      %46 = tpu.dynamic_rotate %41 by %c96_i32_25 dim 1 : vector<1x128xf32>, i32 -> vector<1x128xf32>
      %47 = arith.addf %45, %46 : vector<1x128xf32>
      %cst_26 = arith.constant 0.00833333377 : f32
      %48 = vector.broadcast %cst_26 : f32 to vector<1x128xf32>
      %49 = arith.mulf %47, %48 : vector<1x128xf32>
      %50 = arith.mulf %40, %40 : vector<1x128xf32>
      %51 = arith.subf %49, %50 : vector<1x128xf32>
      %cst_27 = arith.constant 0.000000e+00 : f32
      %52 = vector.broadcast %cst_27 : f32 to vector<1x128xf32>
      %53 = arith.maximumf %51, %52 : vector<1x128xf32>
      %c0_28 = arith.constant 0 : index
      %c0_29 = arith.constant 0 : index
      %54 = vector.load %arg3[%c0_28, %c0_29] : memref<1x128xf32, #tpu.memory_space<vmem>>, vector<1x128xf32>
      %cst_30 = arith.constant 9.99999974E-6 : f32
      %55 = vector.broadcast %cst_30 : f32 to vector<1x128xf32>
      %56 = arith.addf %53, %55 : vector<1x128xf32>
      %57 = math.rsqrt %56 : vector<1x128xf32>
      %58 = arith.mulf %54, %57 : vector<1x128xf32>
      %c0_31 = arith.constant 0 : index
      %c0_32 = arith.constant 0 : index
      %59 = vector.load %arg5[%c0_31, %c0_32] : memref<1x128xf32, #tpu.memory_space<vmem>>, vector<1x128xf32>
      tpu.vector_store %arg5[%c0_31, %c0_32], %58 {strides = array<i32>} : memref<1x128xf32, #tpu.memory_space<vmem>>, vector<1x128xf32>,
      %c0_33 = arith.constant 0 : index
      %c0_34 = arith.constant 0 : index
      %60 = vector.load %arg4[%c0_33, %c0_34] : memref<1x128xf32, #tpu.memory_space<vmem>>, vector<1x128xf32>
      %c0_35 = arith.constant 0 : index
      %c0_36 = arith.constant 0 : index
      %61 = vector.load %arg9[%c0_35, %c0_36] : memref<1x128xf32, #tpu.memory_space<vmem>>, vector<1x128xf32>
      %62 = arith.addf %61, %40 : vector<1x128xf32>
      %63 = arith.mulf %62, %58 : vector<1x128xf32>
      %64 = arith.subf %60, %63 : vector<1x128xf32>
      %c0_37 = arith.constant 0 : index
      %c0_38 = arith.constant 0 : index
      %65 = vector.load %arg6[%c0_37, %c0_38] : memref<1x128xf32, #tpu.memory_space<vmem>>, vector<1x128xf32>
      tpu.vector_store %arg6[%c0_37, %c0_38], %64 {strides = array<i32>} : memref<1x128xf32, #tpu.memory_space<vmem>>, vector<1x128xf32>,
    } else {
    }
    return
  }
  func.func @transform_0(%arg0: i32) -> (i32, i32) {
    %c0_i32 = arith.constant 0 : i32
    %c0_i32_0 = arith.constant 0 : i32
    return %arg0, %c0_i32 : i32, i32
  }
  func.func @transform_1(%arg0: i32) -> (i32, i32) {
    %c0_i32 = arith.constant 0 : i32
    %c0_i32_0 = arith.constant 0 : i32
    %c0_i32_1 = arith.constant 0 : i32
    return %c0_i32, %c0_i32_0 : i32, i32
  }
  func.func @transform_2(%arg0: i32) -> (i32, i32) {
    %c0_i32 = arith.constant 0 : i32
    %c0_i32_0 = arith.constant 0 : i32
    %c0_i32_1 = arith.constant 0 : i32
    return %c0_i32, %c0_i32_0 : i32, i32
  }
  func.func @transform_3(%arg0: i32) -> (i32, i32) {
    %c0_i32 = arith.constant 0 : i32
    %c0_i32_0 = arith.constant 0 : i32
    %c0_i32_1 = arith.constant 0 : i32
    return %c0_i32, %c0_i32_0 : i32, i32
  }
  func.func @transform_4(%arg0: i32) -> (i32, i32) {
    %c0_i32 = arith.constant 0 : i32
    %c0_i32_0 = arith.constant 0 : i32
    %c0_i32_1 = arith.constant 0 : i32
    return %c0_i32, %c0_i32_0 : i32, i32
  }
  func.func @transform_5(%arg0: i32) -> (i32, i32) {
    %c0_i32 = arith.constant 0 : i32
    %c0_i32_0 = arith.constant 0 : i32
    %c0_i32_1 = arith.constant 0 : i32
    return %c0_i32, %c0_i32_0 : i32, i32
  }
}

</mosaic_0001>

<llo_original>
// kernel: tpu_custom_call.1
$region0: #{tpu_custom_call.1}
  #allocation0 [shape = 'u32[]', space=smem, size = 0x4, offset = 0x4, fixed_abs, tag = 'smem constant byte address 0x4 - core index']
  #allocation1 [shape = 'u32[72,128]{1,0:T(1,128)}', space=vmem, size = 0x9000, scoped, tag = 'internal scratch']
  #allocation2 [shape = 'f32[1,128]{1,0:T(1,128)}', space=vmem, size = 0x200, scoped, tag = 'scratch operand']
  #allocation3 [shape = 'f32[1,128]{1,0:T(1,128)}', space=vmem, size = 0x200, scoped, tag = 'scratch operand']
  #allocation4 [shape = 'f32[1,128]{1,0:T(1,128)}', space=vmem, size = 0x200, scoped, tag = 'scratch operand']
  %s0 = inlined_call_operand.hbm [shape: f32[30,128], index: 0, kind: input, shape index: {}]
  %s1 = inlined_call_operand.hbm [shape: bf16[128,128], index: 1, kind: input, shape index: {}]
  %s2 = inlined_call_operand.vmem [shape: f32[1,128], index: 2, kind: input, shape index: {}]
  %s3 = inlined_call_operand.vmem [shape: f32[1,128], index: 3, kind: input, shape index: {}]
  %s4 = inlined_call_operand.hbm [shape: f32[1,128], index: 4, kind: output, shape index: {0}]
  %s5 = inlined_call_operand.hbm [shape: f32[1,128], index: 5, kind: output, shape index: {1}]
  %6 = xla_tuple %s4, %s5
  %s7 = sld [smem:[#allocation0]]
  $region73: #{tpu_custom_call.1} parent=0
    _
  %s9 = ssub.s32 1, %s7
  %s10 = scalar_select 0, %s9, %s7
  $region1: #{tpu_custom_call.1} parent=0
    #allocation5 [shape = 'u8[16384]{0}', space=vmem, size = 0x4000, scoped, tag = 'input window, operand 0']
    #allocation6 [shape = 's32[2]{0}', space=sflag, size = 0x8, scoped, tag = 'scoped memory for tpu_custom_call.1']
    #allocation7 [shape = 's32[2]{0}', space=sflag, size = 0x8, scoped, tag = 'scoped memory for tpu_custom_call.1']
    #allocation8 [shape = 'u8[32768]{0}', space=vmem, size = 0x8000, scoped, tag = 'input window, operand 1, single buffered']
    #allocation9 [shape = 's32[1]{0}', space=sflag, size = 0x4, scoped, tag = 'scoped memory for tpu_custom_call.1']
    #allocation10 [shape = 'u8[512]{0}', space=vmem, size = 0x400, scoped, tag = 'output window, operand 0, single buffered']
    #allocation11 [shape = 'u8[512]{0}', space=vmem, size = 0x400, scoped, tag = 'output window, operand 1, single buffered']
    #allocation12 [shape = 's32[1]{0}', space=sflag, size = 0x4, scoped, tag = 'scoped memory for tpu_custom_call.1']
    %11 = vsyncpa [#allocation6], 0
    %s12 = scalar_lea.sflag [#allocation6], 1
    %13 = vsyncpa %s12, 0
    %14 = vsyncpa [#allocation9], 0
    %15 = vsyncpa [#allocation7], 0
    %16 = vsyncpa [#allocation12], 0
    loop: start=0, step=1, limit=4
    $region2: #{tpu_custom_call.1} parent=1 // loop_pre_header
      _
    $region3: #{tpu_custom_call.1} parent=1 // loop_header
      %s18 = sphi 0, %s22
      %p19 = scmp.ge.s32.totalorder %s18, 4
      %s28 = sphi 0, %s30
      %s31 = sphi 0, %s28
      %s32 = sphi 0, %s31
      %s48 = sphi 0, %s32
      %s52 = sphi 0, %s52
      %s54 = sphi 0, %s52
      %s55 = sphi 0, %s54
      %s69 = sphi 0, %s55
      %s73 = sphi 0, %s73
      %s75 = sphi 0, %s73
      %s76 = sphi 0, %s75
      %s90 = sphi 0, %s76
      %s94 = sphi 0, %s94
      %s96 = sphi 0, %s94
      %s97 = sphi 0, %s96
      %s111 = sphi 0, %s97
      %s115 = sphi 0, %s115
      %s117 = sphi 0, %s115
      %s118 = sphi 0, %s117
      %s132 = sphi 0, %s118
      %s136 = sphi 0, %s136
      %s138 = sphi 0, %s136
      %s139 = sphi 0, %s138
      %s153 = sphi 0, %s139
    $region4: #{tpu_custom_call.1} parent=1 // loop_header_branch
      %21 = sbr.rel (%p19) target = $region8
    $region5: #{tpu_custom_call.1} parent=1 // loop_body
      %s23 = ssub.s32 %s18, 1
      %s24 = ssub.s32 %s18, 2
      %s25 = sadd.s32 %s18, 1
      %s26 = ssub.s32 %s18, %s25
      %p27 = scmp.eq.s32.totalorder %s26, 0
      %s29 = sadd.s32 %s28, 1
      %s30 = scalar_select %p27, %s28, %s29
      %p33 = pneg %p27
      %p34 = scmp.eq.s32.totalorder %s18, 1
      %p35 = por %p33, %p34
      %p36 = scmp.ne.s32.totalorder %s28, %s31
      %p37 = scmp.eq.s32.totalorder %s18, 0
      %p38 = por %p36, %p37
      %p39 = scmp.ne.s32.totalorder %s28, %s31
      %p40 = scmp.eq.s32.totalorder %s23, 1
      %p41 = por %p39, %p40
      %p42 = scmp.ne.s32.totalorder %s31, %s32
      %p43 = scmp.eq.s32.totalorder %s23, 0
      %p44 = por %p42, %p43
      %p45 = scmp.ne.s32.totalorder %s31, %s32
      %p46 = scmp.eq.s32.totalorder %s24, 1
      %p47 = por %p45, %p46
      %p49 = scmp.ne.s32.totalorder %s32, %s48
      %p50 = scmp.eq.s32.totalorder %s24, 0
      %p51 = por %p49, %p50
      %s53 = sadd.s32 %s52, 1
      %p56 = scmp.eq.s32.totalorder %s18, 1
      %p57 = scmp.ne.s32.totalorder %s52, %s54
      %p58 = scmp.eq.s32.totalorder %s18, 0
      %p59 = por %p57, %p58
      %p60 = scmp.ne.s32.totalorder %s52, %s54
      %p61 = scmp.eq.s32.totalorder %s23, 1
      %p62 = por %p60, %p61
      %p63 = scmp.ne.s32.totalorder %s54, %s55
      %p64 = scmp.eq.s32.totalorder %s23, 0
      %p65 = por %p63, %p64
      %p66 = scmp.ne.s32.totalorder %s54, %s55
      %p67 = scmp.eq.s32.totalorder %s24, 1
      %p68 = por %p66, %p67
      %p70 = scmp.ne.s32.totalorder %s55, %s69
      %p71 = scmp.eq.s32.totalorder %s24, 0
      %p72 = por %p70, %p71
      %s74 = sadd.s32 %s73, 1
      %p77 = scmp.eq.s32.totalorder %s18, 1
      %p78 = scmp.ne.s32.totalorder %s73, %s75
      %p79 = scmp.eq.s32.totalorder %s18, 0
      %p80 = por %p78, %p79
      %p81 = scmp.ne.s32.totalorder %s73, %s75
      %p82 = scmp.eq.s32.totalorder %s23, 1
      %p83 = por %p81, %p82
      %p84 = scmp.ne.s32.totalorder %s75, %s76
      %p85 = scmp.eq.s32.totalorder %s23, 0
      %p86 = por %p84, %p85
      %p87 = scmp.ne.s32.totalorder %s75, %s76
      %p88 = scmp.eq.s32.totalorder %s24, 1
      %p89 = por %p87, %p88
      %p91 = scmp.ne.s32.totalorder %s76, %s90
      %p92 = scmp.eq.s32.totalorder %s24, 0
      %p93 = por %p91, %p92
      %s95 = sadd.s32 %s94, 1
      %p98 = scmp.eq.s32.totalorder %s18, 1
      %p99 = scmp.ne.s32.totalorder %s94, %s96
      %p100 = scmp.eq.s32.totalorder %s18, 0
      %p101 = por %p99, %p100
      %p102 = scmp.ne.s32.totalorder %s94, %s96
      %p103 = scmp.eq.s32.totalorder %s23, 1
      %p104 = por %p102, %p103
      %p105 = scmp.ne.s32.totalorder %s96, %s97
      %p106 = scmp.eq.s32.totalorder %s23, 0
      %p107 = por %p105, %p106
      %p108 = scmp.ne.s32.totalorder %s96, %s97
      %p109 = scmp.eq.s32.totalorder %s24, 1
      %p110 = por %p108, %p109
      %p112 = scmp.ne.s32.totalorder %s97, %s111
      %p113 = scmp.eq.s32.totalorder %s24, 0
      %p114 = por %p112, %p113
      %s116 = sadd.s32 %s115, 1
      %p119 = scmp.eq.s32.totalorder %s18, 1
      %p120 = scmp.ne.s32.totalorder %s115, %s117
      %p121 = scmp.eq.s32.totalorder %s18, 0
      %p122 = por %p120, %p121
      %p123 = scmp.ne.s32.totalorder %s115, %s117
      %p124 = scmp.eq.s32.totalorder %s23, 1
      %p125 = por %p123, %p124
      %p126 = scmp.ne.s32.totalorder %s117, %s118
      %p127 = scmp.eq.s32.totalorder %s23, 0
      %p128 = por %p126, %p127
      %p129 = scmp.ne.s32.totalorder %s117, %s118
      %p130 = scmp.eq.s32.totalorder %s24, 1
      %p131 = por %p129, %p130
      %p133 = scmp.ne.s32.totalorder %s118, %s132
      %p134 = scmp.eq.s32.totalorder %s24, 0
      %p135 = por %p133, %p134
      %s137 = sadd.s32 %s136, 1
      %p140 = scmp.eq.s32.totalorder %s18, 1
      %p141 = scmp.ne.s32.totalorder %s136, %s138
      %p142 = scmp.eq.s32.totalorder %s18, 0
      %p143 = por %p141, %p142
      %p144 = scmp.ne.s32.totalorder %s136, %s138
      %p145 = scmp.eq.s32.totalorder %s23, 1
      %p146 = por %p144, %p145
      %p147 = scmp.ne.s32.totalorder %s138, %s139
      %p148 = scmp.eq.s32.totalorder %s23, 0
      %p149 = por %p147, %p148
      %p150 = scmp.ne.s32.totalorder %s138, %s139
      %p151 = scmp.eq.s32.totalorder %s24, 1
      %p152 = por %p150, %p151
      %p154 = scmp.ne.s32.totalorder %s139, %s153
      %p155 = scmp.eq.s32.totalorder %s24, 0
      %p156 = por %p154, %p155
      %p157 = scmp.le.s32.totalorder 1, %s18
      %p158 = scmp.lt.s32.totalorder %s18, 3
      %p159 = pnand %p157, %p158
      %p160 = pneg %p159
      // Predicated region
      $region9: #{tpu_custom_call.1} parent=5 // pred_check
        _
      $region10: #{tpu_custom_call.1} parent=5 // pred_check_branch
        %162 = sbr.rel (%p159) target = $region12
      $region11: #{tpu_custom_call.1} parent=5 // pred_region
        %s163 = ssub.s32 %s18, 1
        // Predicated region
        $region13: #{tpu_custom_call.1} parent=11 // pred_check
          %p164 = pneg %p65
        $region14: #{tpu_custom_call.1} parent=11 // pred_check_branch
          %166 = sbr.rel (%p164) target = $region16
        $region15: #{tpu_custom_call.1} parent=11 // pred_region
          %168 = vsyncadd [#allocation9], 0
          %s169 = sshll.u32 %s1, 4
          %s170 = int_to_ptr.hbm [resolvable:$true] %s169
          %s171 = sshll.u32 [#allocation8], 4
          %s172 = int_to_ptr.vmem [resolvable:$true] %s171
          %177 = dma.hbm_to_vmem [thread:$0]  %s170, 1024, %s172, [#allocation9], 64, 64, 4
        $region16: #{tpu_custom_call.1} parent=11 // pred_fallthru
          _
        // Predicated region
        $region17: #{tpu_custom_call.1} parent=11 // pred_check
          %p178 = pneg %p86
        $region18: #{tpu_custom_call.1} parent=11 // pred_check_branch
          %180 = sbr.rel (%p178) target = $region20
        $region19: #{tpu_custom_call.1} parent=11 // pred_region
          _
        $region20: #{tpu_custom_call.1} parent=11 // pred_fallthru
          _
        // Predicated region
        $region21: #{tpu_custom_call.1} parent=11 // pred_check
          %p181 = pneg %p107
        $region22: #{tpu_custom_call.1} parent=11 // pred_check_branch
          %183 = sbr.rel (%p181) target = $region24
        $region23: #{tpu_custom_call.1} parent=11 // pred_region
          _
        $region24: #{tpu_custom_call.1} parent=11 // pred_fallthru
          _
      $region12: #{tpu_custom_call.1} parent=5 // pred_fallthru
        _
      %p184 = scmp.lt.s32.totalorder %s18, 2
      // Predicated region
      $region25: #{tpu_custom_call.1} parent=5 // pred_check
        %p185 = pneg %p184
      $region26: #{tpu_custom_call.1} parent=5 // pred_check_branch
        %187 = sbr.rel (%p185) target = $region28
      $region27: #{tpu_custom_call.1} parent=5 // pred_region
        // Predicated region
        $region29: #{tpu_custom_call.1} parent=27 // pred_check
          %p188 = pneg %p38
        $region30: #{tpu_custom_call.1} parent=27 // pred_check_branch
          %190 = sbr.rel (%p188) target = $region32
        $region31: #{tpu_custom_call.1} parent=27 // pred_region
          %s191 = sand.u32 %s28, 1
          %s192 = scalar_lea.sflag [#allocation6], %s191
          %s193 = sand.u32 %s28, 1
          %s194 = smul.addr %s193, 16
          %s195 = scalar_lea.vmem [#allocation5], %s194
          %s196 = smul.u32 2, %s18
          %198 = vsyncadd %s192, 0
          %s199 = smul.addr %s196, 8
          %s200 = scalar_lea.hbm %s0, %s199
          %s201 = sshll.u32 %s200, 4
          %s202 = int_to_ptr.hbm [resolvable:$true] %s201
          %s203 = sshll.u32 %s195, 4
          %s204 = int_to_ptr.vmem [resolvable:$true] %s203
          %209 = dma.hbm_to_vmem [thread:$0]  %s202, 256, %s204, %s192, 128, 128, 8
        $region32: #{tpu_custom_call.1} parent=27 // pred_fallthru
          _
      $region28: #{tpu_custom_call.1} parent=5 // pred_fallthru
        _
      %p210 = scmp.le.s32.totalorder 1, %s18
      %p211 = scmp.lt.s32.totalorder %s18, 3
      %p212 = pnand %p210, %p211
      %p213 = pneg %p212
      // Predicated region
      $region33: #{tpu_custom_call.1} parent=5 // pred_check
        _
      $region34: #{tpu_custom_call.1} parent=5 // pred_check_branch
        %215 = sbr.rel (%p212) target = $region36
      $region35: #{tpu_custom_call.1} parent=5 // pred_region
        %s216 = ssub.s32 %s18, 1
        %s217 = sand.u32 %s31, 1
        %s218 = scalar_lea.sflag [#allocation6], %s217
        %s219 = sand.u32 %s31, 1
        %s220 = smul.addr %s219, 16
        %s221 = scalar_lea.vmem [#allocation5], %s220
        // Predicated region
        $region37: #{tpu_custom_call.1} parent=35 // pred_check
          %p222 = pneg %p44
        $region38: #{tpu_custom_call.1} parent=35 // pred_check_branch
          %224 = sbr.rel (%p222) target = $region40
        $region39: #{tpu_custom_call.1} parent=35 // pred_region
          %226 = dma.done %s218, 256
        $region40: #{tpu_custom_call.1} parent=35 // pred_fallthru
          _
        // Predicated region
        $region41: #{tpu_custom_call.1} parent=35 // pred_check
          %p227 = pneg %p65
        $region42: #{tpu_custom_call.1} parent=35 // pred_check_branch
          %229 = sbr.rel (%p227) target = $region44
        $region43: #{tpu_custom_call.1} parent=35 // pred_region
          %231 = dma.done [#allocation9], 1024
        $region44: #{tpu_custom_call.1} parent=35 // pred_fallthru
          _
        %s232 = sand.u32 %s31, 1
        %s233 = scalar_lea.sflag [#allocation6], %s232
        %s234 = sand.u32 %s31, 1
        %s235 = smul.addr %s234, 16
        %s236 = scalar_lea.vmem [#allocation5], %s235
        %p237 = pneg %p44
        %p238 = pneg %p41
        %p239 = pneg %p65
        %p240 = pneg %p62
        %p241 = pneg %p86
        %p242 = pneg %p83
        %p243 = pneg %p107
        %p244 = pneg %p104
        %p245 = pneg %p128
        %p246 = pneg %p125
        %p247 = pneg %p149
        %p248 = pneg %p146
        %s249 = smul.u32 2, %s23
        %v250 = vld [vmem:[%s221] sm:$0xff]
        %v251 = vld [vmem:[%s221 + $0x8] sm:$0xff]
        %v252 = vpack.c.bf16 %v251, %v250
        %v253 = vld [vmem:[#allocation8] sm:$0xf]
        %v254 = vld [vmem:[#allocation8 + $0x4] sm:$0xf]
        %v255 = vld [vmem:[#allocation8 + $0x8] sm:$0xf]
        %v256 = vld [vmem:[#allocation8 + $0xc] sm:$0xf]
        %v257 = vld [vmem:[#allocation8 + $0x10] sm:$0xf]
        %v258 = vld [vmem:[#allocation8 + $0x14] sm:$0xf]
        %v259 = vld [vmem:[#allocation8 + $0x18] sm:$0xf]
        %v260 = vld [vmem:[#allocation8 + $0x1c] sm:$0xf]
        %v261 = vld [vmem:[#allocation8 + $0x20] sm:$0xf]
        %v262 = vld [vmem:[#allocation8 + $0x24] sm:$0xf]
        %v263 = vld [vmem:[#allocation8 + $0x28] sm:$0xf]
        %v264 = vld [vmem:[#allocation8 + $0x2c] sm:$0xf]
        %v265 = vld [vmem:[#allocation8 + $0x30] sm:$0xf]
        %v266 = vld [vmem:[#allocation8 + $0x34] sm:$0xf]
        %v267 = vld [vmem:[#allocation8 + $0x38] sm:$0xf]
        %v268 = vld [vmem:[#allocation8 + $0x3c] sm:$0xf]
        %v285 = vunpack.c.l.b16 %v253
        %v286 = vunpack.c.l.b16 %v254
        %v287 = vunpack.c.l.b16 %v255
        %v288 = vunpack.c.l.b16 %v256
        %v289 = vunpack.c.l.b16 %v257
        %v290 = vunpack.c.l.b16 %v258
        %v291 = vunpack.c.l.b16 %v259
        %v292 = vunpack.c.l.b16 %v260
        %v293 = vunpack.c.l.b16 %v261
        %v294 = vunpack.c.l.b16 %v262
        %v295 = vunpack.c.l.b16 %v263
        %v296 = vunpack.c.l.b16 %v264
        %v297 = vunpack.c.l.b16 %v265
        %v298 = vunpack.c.l.b16 %v266
        %v299 = vunpack.c.l.b16 %v267
        %v300 = vunpack.c.l.b16 %v268
        %v301 = vpack.c.b16 %v286, %v285
        %v302 = vpack.c.b16 %v288, %v287
        %v303 = vpack.c.b16 %v290, %v289
        %v304 = vpack.c.b16 %v292, %v291
        %v305 = vpack.c.b16 %v294, %v293
        %v306 = vpack.c.b16 %v296, %v295
        %v307 = vpack.c.b16 %v298, %v297
        %v308 = vpack.c.b16 %v300, %v299
        %317 = vmatpush.bf16.msra.mxu0 %v308
        %318 = vmatpush.bf16.msra.mxu0 %v307
        %319 = vmatpush.bf16.msra.mxu0 %v306
        %320 = vmatpush.bf16.msra.mxu0 %v305
        %321 = vmatpush.bf16.msra.mxu0 %v304
        %322 = vmatpush.bf16.msra.mxu0 %v303
        %323 = vmatpush.bf16.msra.mxu0 %v302
        %324 = vmatpush.bf16.msra.mxu0 %v301
        %325 = vmatmul.bf16.gmra.mxu0 %v252
        %v326 = vpop.f32.mrf.mxu0
        %v327 = vadd.f32 0.0, %v326
        %v328 = vpop.f32.mrf.mxu0
        %v329 = vadd.f32 0.0, %v328
        %330 = vdwg.mxu0
        %v331 = vlaneseq
        %v332 = vshrl.u32 %v331, 7
        %v333 = vadd.s32 %v332, 8
        %s334 = smul.u32 %s23, 16
        %v335 = vstv %s334
        %v336 = vadd.s32 %v332, %v335
        %v337 = vadd.s32 %v333, %v335
        %vm338 = vcmp.lt.s32.totalorder %v336, 30
        %vm339 = vcmp.lt.s32.totalorder %v337, 30
        %p340 = scmp.eq.s32.totalorder %s23, 0
        // Predicated region
        $region45: #{tpu_custom_call.1} parent=35 // pred_check
          %p341 = pneg %p340
        $region46: #{tpu_custom_call.1} parent=35 // pred_check_branch
          %343 = sbr.rel (%p341) target = $region48
        $region47: #{tpu_custom_call.1} parent=35 // pred_region
          %344 = vst [vmem:[#allocation2] sm:$0x1] 0.0
          %345 = vst [vmem:[#allocation3] sm:$0x1] 0.0
          %v346 = vsel %vm338, %v327, 0.0
          %v347 = vsel %vm339, %v329, 0.0
          %v348 = vadd.f32 %v346, %v347
          %v349 = vrot.slane %v348, 4
          %v350 = vadd.f32 %v348, %v349
          %v351 = vrot.slane %v350, 2
          %v352 = vadd.f32 %v350, %v351
          %v353 = vrot.slane %v352, 1
          %v354 = vadd.f32 %v352, %v353
          %355 = vrot.lane.b32.xlu0 %v354, 32
          %v356 = vpop.permute.xlu0 %355
          %v357 = vadd.f32 %v354, %v356
          %358 = vrot.lane.b32.xlu0 %v354, 64
          %v359 = vpop.permute.xlu0 %358
          %v360 = vadd.f32 %v357, %v359
          %361 = vrot.lane.b32.xlu0 %v354, 96
          %v362 = vpop.permute.xlu0 %361
          %v363 = vadd.f32 %v360, %v362
          %v364 = vmul.f32 %v363, 0.015625
          %365 = vst [vmem:[#allocation4] sm:$0x1] %v364
        $region48: #{tpu_custom_call.1} parent=35 // pred_fallthru
          _
        %v366 = vld [vmem:[#allocation4] sm:$0x1]
        %v368 = vperm.slane %v366, 0
        %v370 = vsub.f32 %v327, %v368
        %v371 = vsub.f32 %v329, %v368
        %v372 = vsel %vm338, %v370, 0.0
        %v373 = vsel %vm339, %v371, 0.0
        %v374 = vld [vmem:[#allocation2] sm:$0x1]
        %v375 = vadd.f32 %v372, %v373
        %v376 = vrot.slane %v375, 4
        %v377 = vadd.f32 %v375, %v376
        %v378 = vrot.slane %v377, 2
        %v379 = vadd.f32 %v377, %v378
        %v380 = vrot.slane %v379, 1
        %v381 = vadd.f32 %v379, %v380
        %v382 = vadd.f32 %v374, %v381
        %383 = vst [vmem:[#allocation2] sm:$0x1] %v382
        %v384 = vld [vmem:[#allocation3] sm:$0x1]
        %v385 = vmul.f32 %v372, %v372
        %v386 = vmul.f32 %v373, %v373
        %v387 = vadd.f32 %v385, %v386
        %v388 = vrot.slane %v387, 4
        %v389 = vadd.f32 %v387, %v388
        %v390 = vrot.slane %v389, 2
        %v391 = vadd.f32 %v389, %v390
        %v392 = vrot.slane %v391, 1
        %v393 = vadd.f32 %v391, %v392
        %v394 = vadd.f32 %v384, %v393
        %395 = vst [vmem:[#allocation3] sm:$0x1] %v394
        %p396 = scmp.eq.s32.totalorder %s23, 1
        // Predicated region
        $region49: #{tpu_custom_call.1} parent=35 // pred_check
          %p397 = pneg %p396
        $region50: #{tpu_custom_call.1} parent=35 // pred_check_branch
          %399 = sbr.rel (%p397) target = $region52
        $region51: #{tpu_custom_call.1} parent=35 // pred_region
          %v400 = vld [vmem:[#allocation2] sm:$0x1]
          %401 = vrot.lane.b32.xlu0 %v400, 32
          %v402 = vpop.permute.xlu0 %401
          %v403 = vadd.f32 %v400, %v402
          %404 = vrot.lane.b32.xlu0 %v400, 64
          %v405 = vpop.permute.xlu0 %404
          %v406 = vadd.f32 %v403, %v405
          %407 = vrot.lane.b32.xlu0 %v400, 96
          %v408 = vpop.permute.xlu0 %407
          %v409 = vadd.f32 %v406, %v408
          %v410 = vmul.f32 %v409, 0.008333334
          %v411 = vld [vmem:[#allocation3] sm:$0x1]
          %412 = vrot.lane.b32.xlu0 %v411, 32
          %v413 = vpop.permute.xlu0 %412
          %v414 = vadd.f32 %v411, %v413
          %415 = vrot.lane.b32.xlu0 %v411, 64
          %v416 = vpop.permute.xlu0 %415
          %v417 = vadd.f32 %v414, %v416
          %418 = vrot.lane.b32.xlu0 %v411, 96
          %v419 = vpop.permute.xlu0 %418
          %v420 = vadd.f32 %v417, %v419
          %v421 = vmul.f32 %v420, 0.008333334
          %v422 = vmul.f32 %v410, %v410
          %v423 = vsub.f32 %v421, %v422
          %v424 = vmax.f32 %v423, 0.0
          %v425 = vld [vmem:[%s2] sm:$0x1]
          %v426 = vadd.f32 %v424, 1e-05
          %v427 = vrsqrt.pop %v426
          %v428 = vmul.f32 %v427, %v426
          %v429 = vmul.f32 %v428, %v427
          %v430 = vmul.f32 0.5, %v429
          %v431 = vsub.f32 1.5, %v430
          %v432 = vmul.f32 %v427, %v431
          %vm433 = vweird.f32 %v426
          %vm434 = vweird.f32 %v427
          %vm435 = vmor %vm433, %vm434
          %v436 = vsel %vm435, %v427, %v432
          %v437 = vmul.f32 %v425, %v436
          %438 = vst [vmem:[#allocation10] sm:$0x1] %v437
          %v439 = vld [vmem:[%s3] sm:$0x1]
          %v440 = vld [vmem:[#allocation4] sm:$0x1]
          %v441 = vadd.f32 %v440, %v410
          %v442 = vmul.f32 %v441, %v437
          %v443 = vsub.f32 %v439, %v442
          %444 = vst [vmem:[#allocation11] sm:$0x1] %v443
        $region52: #{tpu_custom_call.1} parent=35 // pred_fallthru
          _
        // Predicated region
        $region53: #{tpu_custom_call.1} parent=35 // pred_check
          %p445 = pneg %p125
        $region54: #{tpu_custom_call.1} parent=35 // pred_check_branch
          %447 = sbr.rel (%p445) target = $region56
        $region55: #{tpu_custom_call.1} parent=35 // pred_region
          %449 = vsyncadd [#allocation7], 0
          %s451 = sshll.u32 [#allocation10], 4
          %s452 = int_to_ptr.vmem [resolvable:$true] %s451
          %s453 = sshll.u32 %s4, 4
          %s454 = int_to_ptr.hbm [resolvable:$true] %s453
          %456 = dma.vmem_to_hbm [thread:$0]  %s452, 16, %s454, [#allocation7]
        $region56: #{tpu_custom_call.1} parent=35 // pred_fallthru
          _
        // Predicated region
        $region57: #{tpu_custom_call.1} parent=35 // pred_check
          %p457 = pneg %p146
        $region58: #{tpu_custom_call.1} parent=35 // pred_check_branch
          %459 = sbr.rel (%p457) target = $region60
        $region59: #{tpu_custom_call.1} parent=35 // pred_region
          %461 = vsyncadd [#allocation12], 0
          %s463 = sshll.u32 [#allocation11], 4
          %s464 = int_to_ptr.vmem [resolvable:$true] %s463
          %s465 = sshll.u32 %s5, 4
          %s466 = int_to_ptr.hbm [resolvable:$true] %s465
          %468 = dma.vmem_to_hbm [thread:$0]  %s464, 16, %s466, [#allocation12]
        $region60: #{tpu_custom_call.1} parent=35 // pred_fallthru
          _
        // Predicated region
        $region61: #{tpu_custom_call.1} parent=35 // pred_check
          %p469 = pneg %p125
        $region62: #{tpu_custom_call.1} parent=35 // pred_check_branch
          %471 = sbr.rel (%p469) target = $region64
        $region63: #{tpu_custom_call.1} parent=35 // pred_region
          %473 = dma.done [#allocation7], 16
        $region64: #{tpu_custom_call.1} parent=35 // pred_fallthru
          _
        // Predicated region
        $region65: #{tpu_custom_call.1} parent=35 // pred_check
          %p474 = pneg %p146
        $region66: #{tpu_custom_call.1} parent=35 // pred_check_branch
          %476 = sbr.rel (%p474) target = $region68
        $region67: #{tpu_custom_call.1} parent=35 // pred_region
          %478 = dma.done [#allocation12], 16
        $region68: #{tpu_custom_call.1} parent=35 // pred_fallthru
          _
      $region36: #{tpu_custom_call.1} parent=5 // pred_fallthru
        _
      %p479 = scmp.le.s32.totalorder 2, %s18
      // Predicated region
      $region69: #{tpu_custom_call.1} parent=5 // pred_check
        %p480 = pneg %p479
      $region70: #{tpu_custom_call.1} parent=5 // pred_check_branch
        %482 = sbr.rel (%p480) target = $region72
      $region71: #{tpu_custom_call.1} parent=5 // pred_region
        %s483 = ssub.s32 %s18, 2
      $region72: #{tpu_custom_call.1} parent=5 // pred_fallthru
        _
    $region6: #{tpu_custom_call.1} parent=1 // loop_footer
      %s22 = sadd.s32 1, %s18
    $region7: #{tpu_custom_call.1} parent=1 // loop_footer_branch
      %17 = sbr.rel target = $region3
    $region8: #{tpu_custom_call.1} parent=1 // loop_exit
      _
    %484 = vsyncpa [#allocation6], 1
    %s485 = scalar_lea.sflag [#allocation6], 1
    %486 = vsyncpa %s485, 1
    %487 = vsyncpa [#allocation9], 1
    %488 = vsyncpa [#allocation7], 1
    %s489 = scalar_lea.sflag [#allocation7], 1
    %490 = vsyncpa %s489, 1
    %491 = vsyncpa [#allocation12], 1

</llo_original>
